<compile_context>
chip_gen: v5e
topology: v5e:2x2
jax: 0.10.0
libtpu: 0.0.40
codegen_flags: <defaults>
</compile_context>

<pallas_src>
import functools

import jax
import jax.numpy as jnp
import numpy as np
from jax import lax
from jax.experimental import pallas as pl
from jax.experimental.pallas import tpu as pltpu

OW_PAD = 128  # lane-dense padding for the order-weight columns


# ---------------------------------------------------------------------------
# Kernel 1: fused Q/K/V/O1 projection + o-branch ReLU + second Linear.
#   x:     (tile_n, E)
#   wfT:   (E, 4E)      = [Wq; Wk; Wv; Wo1]^T     (grid-resident)
#   bf:    (1, 4E)      = [bq | bk | bv | bo1]
#   wo2T:  (E, OW_PAD)  = Wo2^T zero-padded;  bo2: (1, OW_PAD) zero-padded
# output:
#   proj:  (tile_n, 3E + OW_PAD)  lane-dense slab  Q | K | V | order-weights
# ---------------------------------------------------------------------------
def proj_kernel(x_ref, wfT_ref, bf_ref, wo2T_ref, bo2_ref, proj_ref, *, E):
    x = x_ref[...]
    h = jnp.dot(x, wfT_ref[...], preferred_element_type=jnp.float32) + bf_ref[...]
    proj_ref[:, :3 * E] = h[:, :3 * E]                 # Q | K | V (lane-aligned)
    o1 = jnp.maximum(h[:, 3 * E:], 0.0)                # ReLU(x Wo1^T + bo1)
    proj_ref[:, 3 * E:] = (jnp.dot(o1, wo2T_ref[...],
                                   preferred_element_type=jnp.float32)
                           + bo2_ref[...])             # (tile_n, OW_PAD)


# ---------------------------------------------------------------------------
# Kernel 2: one (batch, head) grid step — softmax(q k^T) v + order combination.
#   q/k/v: (1, S, Dh)   column blocks of the fused proj slab
#   ow:    (1, S, OW_PAD)  order weights (first num_orders lanes valid)
#   out:   (1, S, Dh)   head slice of the final (B, S, E) output
# ---------------------------------------------------------------------------
def attn_order_kernel(q_ref, k_ref, v_ref, ow_ref, out_ref, *, num_orders):
    q = q_ref[0]
    k = k_ref[0]
    v = v_ref[0]
    ow = ow_ref[0]

    # q @ k^T without materializing a transpose (contract last dims).
    s = lax.dot_general(q, k, (((1,), (1,)), ((), ())),
                        preferred_element_type=jnp.float32)          # (S, S)
    m = jnp.max(s, axis=-1, keepdims=True)
    p = jnp.exp(s - m)
    denom = jnp.sum(p, axis=-1, keepdims=True)
    o_h = jnp.dot(p, v, preferred_element_type=jnp.float32)          # (S, Dh)
    # Normalize the (S, Dh) output, not the (S, S) probabilities.  Exact
    # divide: the approx EUP reciprocal is amplified by org**(i+1) beyond
    # tolerance (previous correctness failure).
    org = o_h / denom

    # output = sum_i org**(i+1) * ow[:, i].  Per-row weights via masked
    # lane-reduction (avoids unaligned single-lane slices of the padded ow).
    lane = lax.broadcasted_iota(jnp.int32, ow.shape, 1)
    acc = jnp.zeros_like(org)
    pw = org
    for i in range(num_orders):
        w_i = jnp.sum(jnp.where(lane == i, ow, 0.0), axis=1, keepdims=True)
        acc = acc + pw * w_i
        if i + 1 < num_orders:
            pw = pw * org
    out_ref[0] = acc


# ---------------------------------------------------------------------------
# Wrapper
# ---------------------------------------------------------------------------
def order_qkv_attention(x, wq, bq, wk, bk, wv, bv, wo1, bo1, wo2, bo2,
                        num_heads, num_orders, *, tile_n=512):
    B, S, E = x.shape
    assert E % num_heads == 0
    Dh = E // num_heads
    assert Dh % 128 == 0, "per-head column blocks must be lane-aligned"
    assert E % 128 == 0, "order-weight block offset must be lane-aligned"
    assert num_orders <= OW_PAD
    N = B * S
    H = num_heads

    # One-time host-side packing (tiny): [Wq; Wk; Wv; Wo1]^T -> (E, 4E),
    # Wo2^T / bo2 zero-padded to a full 128-lane block.
    wfT = jnp.concatenate([wq, wk, wv, wo1], axis=0).T                 # (E, 4E)
    bf = jnp.concatenate([bq, bk, bv, bo1]).reshape(1, 4 * E)          # (1, 4E)
    wo2T = jnp.pad(wo2.T, ((0, 0), (0, OW_PAD - num_orders)))          # (E, OW_PAD)
    bo2_p = jnp.pad(bo2, (0, OW_PAD - num_orders)).reshape(1, OW_PAD)

    x2d = x.reshape(N, E)
    tile_n = min(N, tile_n)
    grid_n = pl.cdiv(N, tile_n)
    PW = 3 * E + OW_PAD

    resident = lambda shape: pl.BlockSpec(shape, lambda i: (0, 0))
    # TODO(synk): pipeline_mode=pl.Buffered(1) (or VMEM-scratch fill) for the
    # resident weights once E grows enough that their default double-buffering
    # pressures v7x's 64 MiB VMEM.

    proj = pl.pallas_call(
        functools.partial(proj_kernel, E=E),
        out_shape=jax.ShapeDtypeStruct((N, PW), jnp.float32),
        grid=(grid_n,),
        in_specs=[
            pl.BlockSpec((tile_n, E), lambda i: (i, 0)),
            resident((E, 4 * E)), resident((1, 4 * E)),
            resident((E, OW_PAD)), resident((1, OW_PAD)),
        ],
        out_specs=pl.BlockSpec((tile_n, PW), lambda i: (i, 0)),
        compiler_params=pltpu.CompilerParams(
            dimension_semantics=("parallel",),
            vmem_limit_bytes=32 * 1024 * 1024),
    )(x2d, wfT, bf, wo2T, bo2_p)

    # (N, PW) -> (B, S, PW): metadata-only reshape, no transpose traffic.
    proj = proj.reshape(B, S, PW)

    ow_blk = (3 * E) // OW_PAD     # block index of the order-weight columns
    out = pl.pallas_call(
        functools.partial(attn_order_kernel, num_orders=num_orders),
        out_shape=jax.ShapeDtypeStruct((B, S, E), jnp.float32),
        grid=(B, H),
        in_specs=[
            pl.BlockSpec((1, S, Dh), lambda b, h: (b, 0, h)),           # Q head
            pl.BlockSpec((1, S, Dh), lambda b, h: (b, 0, H + h)),       # K head
            pl.BlockSpec((1, S, Dh), lambda b, h: (b, 0, 2 * H + h)),   # V head
            pl.BlockSpec((1, S, OW_PAD), lambda b, h: (b, 0, ow_blk)),  # order w
        ],
        out_specs=pl.BlockSpec((1, S, Dh), lambda b, h: (b, 0, h)),
        compiler_params=pltpu.CompilerParams(
            dimension_semantics=("parallel", "parallel"),
            vmem_limit_bytes=32 * 1024 * 1024),
    )(proj, proj, proj, proj)

    return out


# ---------------------------------------------------------------------------
# Pure-JAX reference (mirrors the PyTorch forward exactly).
# ---------------------------------------------------------------------------
def order_qkv_attention_ref(x, wq, bq, wk, bk, wv, bv, wo1, bo1, wo2, bo2,
                            num_heads, num_orders):
    B, S, E = x.shape
    Dh = E // num_heads
    q = x @ wq.T + bq
    k = x @ wk.T + bk
    v = x @ wv.T + bv
    o = jax.nn.relu(x @ wo1.T + bo1) @ wo2.T + bo2          # (B, S, num_orders)
    q = q.reshape(B, S, num_heads, Dh).transpose(0, 2, 1, 3)
    k = k.reshape(B, S, num_heads, Dh).transpose(0, 2, 1, 3)
    v = v.reshape(B, S, num_heads, Dh).transpose(0, 2, 1, 3)
    att = jax.nn.softmax(q @ jnp.swapaxes(k, -1, -2), axis=-1)   # no 1/sqrt(d)
    org = (att @ v).transpose(0, 2, 1, 3).reshape(B, S, E)
    output = jnp.zeros_like(org)
    for i in range(num_orders):
        output = output + org ** (i + 1) * o[..., i:i + 1]
    return output


if __name__ == "__main__":
    # Small, TPU-aligned problem: B=2, S=8, embed_dim=256, heads=2 (Dh=128),
    # num_orders=3.  Dh=128 keeps every per-head column block lane-aligned.
    B, S, E, H, ORDERS = 2, 8, 256, 2, 3
    key = jax.random.PRNGKey(0)
    ks = jax.random.split(key, 11)

    bound = 1.0 / np.sqrt(E)  # nn.Linear default init range
    uni = lambda k, shape: jax.random.uniform(k, shape, minval=-bound,
                                              maxval=bound, dtype=jnp.float32)
    x = jax.random.normal(ks[0], (B, S, E), dtype=jnp.float32)
    wq, bq = uni(ks[1], (E, E)), uni(ks[2], (E,))
    wk, bk = uni(ks[3], (E, E)), uni(ks[4], (E,))
    wv, bv = uni(ks[5], (E, E)), uni(ks[6], (E,))
    wo1, bo1 = uni(ks[7], (E, E)), uni(ks[8], (E,))
    wo2, bo2 = uni(ks[9], (ORDERS, E)), uni(ks[10], (ORDERS,))

    out = order_qkv_attention(x, wq, bq, wk, bk, wv, bv,
                              wo1, bo1, wo2, bo2, H, ORDERS)
    out = jax.block_until_ready(out)

    ref = order_qkv_attention_ref(x, wq, bq, wk, bk, wv, bv,
                                  wo1, bo1, wo2, bo2, H, ORDERS)
    np.testing.assert_allclose(np.asarray(out), np.asarray(ref),
                               rtol=2e-3, atol=2e-3)
    print("KERNEL_OK")
</pallas_src>

<mosaic_0001>
module attributes {stable_mosaic.version = 11 : i64} {
  func.func @proj_kernel(%arg0: i32, %arg1: memref<16x256xf32, #tpu.memory_space<vmem>>, %arg2: memref<256x1024xf32, #tpu.memory_space<vmem>>, %arg3: memref<1x1024xf32, #tpu.memory_space<vmem>>, %arg4: memref<256x128xf32, #tpu.memory_space<vmem>>, %arg5: memref<1x128xf32, #tpu.memory_space<vmem>>, %arg6: memref<16x896xf32, #tpu.memory_space<vmem>>) attributes {dimension_semantics = [#tpu.dimension_semantics<parallel>], iteration_bounds = array<i64: 1>, scalar_prefetch = 0 : i64, scratch_operands = 0 : i64, tpu.core_type = #tpu.core_type<tc>, window_params = [{transform_indices = @transform_0, window_bounds = array<i64: 16, 256>}, {pipeline_mode = #tpu.pipeline_mode<synchronous>, transform_indices = @transform_1, window_bounds = array<i64: 256, 1024>}, {pipeline_mode = #tpu.pipeline_mode<synchronous>, transform_indices = @transform_2, window_bounds = array<i64: 1, 1024>}, {pipeline_mode = #tpu.pipeline_mode<synchronous>, transform_indices = @transform_3, window_bounds = array<i64: 256, 128>}, {pipeline_mode = #tpu.pipeline_mode<synchronous>, transform_indices = @transform_4, window_bounds = array<i64: 1, 128>}, {transform_indices = @transform_5, window_bounds = array<i64: 16, 896>}]} {
    %c0 = arith.constant 0 : index
    %c0_0 = arith.constant 0 : index
    %0 = vector.load %arg1[%c0, %c0_0] : memref<16x256xf32, #tpu.memory_space<vmem>>, vector<16x256xf32>
    %c0_1 = arith.constant 0 : index
    %c0_2 = arith.constant 0 : index
    %1 = vector.load %arg2[%c0_1, %c0_2] : memref<256x1024xf32, #tpu.memory_space<vmem>>, vector<256x1024xf32>
    %cst = arith.constant dense<0.000000e+00> : vector<16x1024xf32>
    %2 = tpu.matmul %0, %1, %cst {dimension_numbers = #tpu.dot_dimension_numbers<[1], [0], [0], [1], [0, 0, 1, 1], [], []>} : vector<16x256xf32>, vector<256x1024xf32>, vector<16x1024xf32> -> vector<16x1024xf32>
    %c0_3 = arith.constant 0 : index
    %c0_4 = arith.constant 0 : index
    %3 = vector.load %arg3[%c0_3, %c0_4] : memref<1x1024xf32, #tpu.memory_space<vmem>>, vector<1x1024xf32>
    %4 = vector.broadcast %3 : vector<1x1024xf32> to vector<16x1024xf32>
    %5 = arith.addf %2, %4 : vector<16x1024xf32>
    %6 = vector.extract_strided_slice %5 {offsets = [0, 0], sizes = [16, 768], strides = [1, 1]} : vector<16x1024xf32> to vector<16x768xf32>
    %c0_5 = arith.constant 0 : index
    %c0_6 = arith.constant 0 : index
    %7 = vector.load %arg6[%c0_5, %c0_6] : memref<16x896xf32, #tpu.memory_space<vmem>>, vector<16x768xf32>
    tpu.vector_store %arg6[%c0_5, %c0_6], %6 {strides = array<i32>} : memref<16x896xf32, #tpu.memory_space<vmem>>, vector<16x768xf32>,
    %8 = vector.extract_strided_slice %5 {offsets = [0, 768], sizes = [16, 256], strides = [1, 1]} : vector<16x1024xf32> to vector<16x256xf32>
    %cst_7 = arith.constant 0.000000e+00 : f32
    %9 = vector.broadcast %cst_7 : f32 to vector<16x256xf32>
    %10 = arith.maximumf %8, %9 : vector<16x256xf32>
    %c0_8 = arith.constant 0 : index
    %c0_9 = arith.constant 0 : index
    %11 = vector.load %arg4[%c0_8, %c0_9] : memref<256x128xf32, #tpu.memory_space<vmem>>, vector<256x128xf32>
    %cst_10 = arith.constant dense<0.000000e+00> : vector<16x128xf32>
    %12 = tpu.matmul %10, %11, %cst_10 {dimension_numbers = #tpu.dot_dimension_numbers<[1], [0], [0], [1], [0, 0, 1, 1], [], []>} : vector<16x256xf32>, vector<256x128xf32>, vector<16x128xf32> -> vector<16x128xf32>
    %c0_11 = arith.constant 0 : index
    %c0_12 = arith.constant 0 : index
    %13 = vector.load %arg5[%c0_11, %c0_12] : memref<1x128xf32, #tpu.memory_space<vmem>>, vector<1x128xf32>
    %14 = vector.broadcast %13 : vector<1x128xf32> to vector<16x128xf32>
    %15 = arith.addf %12, %14 : vector<16x128xf32>
    %c0_13 = arith.constant 0 : index
    %c768 = arith.constant 768 : index
    %16 = vector.load %arg6[%c0_13, %c768] : memref<16x896xf32, #tpu.memory_space<vmem>>, vector<16x128xf32>
    tpu.vector_store %arg6[%c0_13, %c768], %15 {strides = array<i32>} : memref<16x896xf32, #tpu.memory_space<vmem>>, vector<16x128xf32>,
    return
  }
  func.func @transform_0(%arg0: i32) -> (i32, i32) {
    %c0_i32 = arith.constant 0 : i32
    %c0_i32_0 = arith.constant 0 : i32
    return %arg0, %c0_i32 : i32, i32
  }
  func.func @transform_1(%arg0: i32) -> (i32, i32) {
    %c0_i32 = arith.constant 0 : i32
    %c0_i32_0 = arith.constant 0 : i32
    %c0_i32_1 = arith.constant 0 : i32
    return %c0_i32, %c0_i32_0 : i32, i32
  }
  func.func @transform_2(%arg0: i32) -> (i32, i32) {
    %c0_i32 = arith.constant 0 : i32
    %c0_i32_0 = arith.constant 0 : i32
    %c0_i32_1 = arith.constant 0 : i32
    return %c0_i32, %c0_i32_0 : i32, i32
  }
  func.func @transform_3(%arg0: i32) -> (i32, i32) {
    %c0_i32 = arith.constant 0 : i32
    %c0_i32_0 = arith.constant 0 : i32
    %c0_i32_1 = arith.constant 0 : i32
    return %c0_i32, %c0_i32_0 : i32, i32
  }
  func.func @transform_4(%arg0: i32) -> (i32, i32) {
    %c0_i32 = arith.constant 0 : i32
    %c0_i32_0 = arith.constant 0 : i32
    %c0_i32_1 = arith.constant 0 : i32
    return %c0_i32, %c0_i32_0 : i32, i32
  }
  func.func @transform_5(%arg0: i32) -> (i32, i32) {
    %c0_i32 = arith.constant 0 : i32
    %c0_i32_0 = arith.constant 0 : i32
    return %arg0, %c0_i32 : i32, i32
  }
}

</mosaic_0001>

<llo_original>
// kernel: tpu_custom_call.1
$region0: #{tpu_custom_call.1}
  #allocation0 [shape = 'u32[]', space=smem, size = 0x4, offset = 0x4, fixed_abs, tag = 'smem constant byte address 0x4 - core index']
  #allocation1 [shape = 'u32[72,128]{1,0:T(1,128)}', space=vmem, size = 0x9000, scoped, tag = 'internal scratch']
  %s0 = inlined_call_operand.hbm [shape: f32[16,256], index: 0, kind: input, shape index: {}]
  %s1 = inlined_call_operand.hbm [shape: f32[256,1024], index: 1, kind: input, shape index: {}]
  %s2 = inlined_call_operand.hbm [shape: f32[1,1024], index: 2, kind: input, shape index: {}]
  %s3 = inlined_call_operand.hbm [shape: f32[256,128], index: 3, kind: input, shape index: {}]
  %s4 = inlined_call_operand.vmem [shape: f32[1,128], index: 4, kind: input, shape index: {}]
  %s5 = inlined_call_operand.hbm [shape: f32[16,896], index: 5, kind: output, shape index: {}]
  %s6 = sld [smem:[#allocation0]]
  $region46: #{tpu_custom_call.1} parent=0
    _
  %s8 = ssub.s32 1, %s6
  %s9 = scalar_select 0, %s8, %s6
  $region1: #{tpu_custom_call.1} parent=0
    #allocation2 [shape = 'u8[16384]{0}', space=vmem, size = 0x4000, scoped, tag = 'input window, operand 0, single buffered']
    #allocation3 [shape = 's32[1]{0}', space=sflag, size = 0x4, scoped, tag = 'scoped memory for tpu_custom_call.1']
    #allocation4 [shape = 's32[1]{0}', space=sflag, size = 0x4, scoped, tag = 'scoped memory for tpu_custom_call.1']
    #allocation5 [shape = 'u8[1048576]{0}', space=vmem, size = 0x100000, scoped, tag = 'input window, operand 1, single buffered']
    #allocation6 [shape = 's32[1]{0}', space=sflag, size = 0x4, scoped, tag = 'scoped memory for tpu_custom_call.1']
    #allocation7 [shape = 'u8[4096]{0}', space=vmem, size = 0x1000, scoped, tag = 'input window, operand 2, single buffered']
    #allocation8 [shape = 'u8[131072]{0}', space=vmem, size = 0x20000, scoped, tag = 'input window, operand 3, single buffered']
    #allocation9 [shape = 's32[1]{0}', space=sflag, size = 0x4, scoped, tag = 'scoped memory for tpu_custom_call.1']
    #allocation10 [shape = 'u8[57344]{0}', space=vmem, size = 0xe000, scoped, tag = 'output window, operand 0, single buffered']
    %10 = vsyncpa [#allocation3], 0
    %11 = vsyncpa [#allocation6], 0
    %12 = vsyncpa [#allocation9], 0
    %13 = vsyncpa [#allocation4], 0
    // Predicated region
    $region2: #{tpu_custom_call.1} parent=1 // pred_check
      _
    $region3: #{tpu_custom_call.1} parent=1 // pred_check_branch
      %15 = sbr.rel (0) target = $region5
    $region4: #{tpu_custom_call.1} parent=1 // pred_region
      %17 = vsyncadd [#allocation3], 0
      %s18 = sshll.u32 %s0, 4
      %s19 = int_to_ptr.hbm [resolvable:$true] %s18
      %s20 = sshll.u32 [#allocation2], 4
      %s21 = int_to_ptr.vmem [resolvable:$true] %s20
      %26 = dma.hbm_to_vmem [thread:$0]  %s19, 512, %s21, [#allocation3], 256, 256, 16
    $region5: #{tpu_custom_call.1} parent=1 // pred_fallthru
      _
    // Predicated region
    $region6: #{tpu_custom_call.1} parent=1 // pred_check
      _
    $region7: #{tpu_custom_call.1} parent=1 // pred_check_branch
      %28 = sbr.rel (0) target = $region9
    $region8: #{tpu_custom_call.1} parent=1 // pred_region
      %30 = vsyncadd [#allocation6], 0
      %s31 = sshll.u32 %s1, 4
      %s32 = int_to_ptr.hbm [resolvable:$true] %s31
      %s33 = sshll.u32 [#allocation5], 4
      %s34 = int_to_ptr.vmem [resolvable:$true] %s33
      %39 = dma.hbm_to_vmem [thread:$0]  %s32, 32768, %s34, [#allocation6], 1024, 1024, 64
    $region9: #{tpu_custom_call.1} parent=1 // pred_fallthru
      _
    // Predicated region
    $region10: #{tpu_custom_call.1} parent=1 // pred_check
      _
    $region11: #{tpu_custom_call.1} parent=1 // pred_check_branch
      %41 = sbr.rel (0) target = $region13
    $region12: #{tpu_custom_call.1} parent=1 // pred_region
      %43 = vsyncadd [#allocation6], 0
      %s45 = sshll.u32 %s2, 4
      %s46 = int_to_ptr.hbm [resolvable:$true] %s45
      %s47 = sshll.u32 [#allocation7], 4
      %s48 = int_to_ptr.vmem [resolvable:$true] %s47
      %50 = dma.hbm_to_vmem [thread:$0]  %s46, 128, %s48, [#allocation6]
    $region13: #{tpu_custom_call.1} parent=1 // pred_fallthru
      _
    // Predicated region
    $region14: #{tpu_custom_call.1} parent=1 // pred_check
      _
    $region15: #{tpu_custom_call.1} parent=1 // pred_check_branch
      %52 = sbr.rel (0) target = $region17
    $region16: #{tpu_custom_call.1} parent=1 // pred_region
      %54 = vsyncadd [#allocation9], 0
      %s55 = sshll.u32 %s3, 4
      %s56 = int_to_ptr.hbm [resolvable:$true] %s55
      %s57 = sshll.u32 [#allocation8], 4
      %s58 = int_to_ptr.vmem [resolvable:$true] %s57
      %63 = dma.hbm_to_vmem [thread:$0]  %s56, 4096, %s58, [#allocation9], 128, 128, 8
    $region17: #{tpu_custom_call.1} parent=1 // pred_fallthru
      _
    // Predicated region
    $region18: #{tpu_custom_call.1} parent=1 // pred_check
      _
    $region19: #{tpu_custom_call.1} parent=1 // pred_check_branch
      %65 = sbr.rel (0) target = $region21
    $region20: #{tpu_custom_call.1} parent=1 // pred_region
      _
    $region21: #{tpu_custom_call.1} parent=1 // pred_fallthru
      _
    // Predicated region
    $region22: #{tpu_custom_call.1} parent=1 // pred_check
      _
    $region23: #{tpu_custom_call.1} parent=1 // pred_check_branch
      %67 = sbr.rel (0) target = $region25
    $region24: #{tpu_custom_call.1} parent=1 // pred_region
      %69 = dma.done [#allocation3], 512
    $region25: #{tpu_custom_call.1} parent=1 // pred_fallthru
      _
    // Predicated region
    $region26: #{tpu_custom_call.1} parent=1 // pred_check
      _
    $region27: #{tpu_custom_call.1} parent=1 // pred_check_branch
      %71 = sbr.rel (0) target = $region29
    $region28: #{tpu_custom_call.1} parent=1 // pred_region
      %73 = dma.done [#allocation6], 32768
    $region29: #{tpu_custom_call.1} parent=1 // pred_fallthru
      _
    // Predicated region
    $region30: #{tpu_custom_call.1} parent=1 // pred_check
      _
    $region31: #{tpu_custom_call.1} parent=1 // pred_check_branch
      %75 = sbr.rel (0) target = $region33
    $region32: #{tpu_custom_call.1} parent=1 // pred_region
      %77 = dma.done [#allocation6], 128
    $region33: #{tpu_custom_call.1} parent=1 // pred_fallthru
      _
    // Predicated region
    $region34: #{tpu_custom_call.1} parent=1 // pred_check
      _
    $region35: #{tpu_custom_call.1} parent=1 // pred_check_branch
      %79 = sbr.rel (0) target = $region37
    $region36: #{tpu_custom_call.1} parent=1 // pred_region
      %81 = dma.done [#allocation9], 4096
    $region37: #{tpu_custom_call.1} parent=1 // pred_fallthru
      _
    %v82 = vld [vmem:[#allocation2] sm:$0xff]
    %v83 = vld [vmem:[#allocation2 + $0x8] sm:$0xff]
    %v84 = vld [vmem:[#allocation2 + $0x10] sm:$0xff]
    %v85 = vld [vmem:[#allocation2 + $0x18] sm:$0xff]
    %v86 = vld [vmem:[#allocation5] sm:$0xff]
    %v87 = vld [vmem:[#allocation5 + $0x8] sm:$0xff]
    %v88 = vld [vmem:[#allocation5 + $0x10] sm:$0xff]
    %v89 = vld [vmem:[#allocation5 + $0x18] sm:$0xff]
    %v90 = vld [vmem:[#allocation5 + $0x20] sm:$0xff]
    %v91 = vld [vmem:[#allocation5 + $0x28] sm:$0xff]
    %v92 = vld [vmem:[#allocation5 + $0x30] sm:$0xff]
    %v93 = vld [vmem:[#allocation5 + $0x38] sm:$0xff]
    %v94 = vld [vmem:[#allocation5 + $0x40] sm:$0xff]
    %v95 = vld [vmem:[#allocation5 + $0x48] sm:$0xff]
    %v96 = vld [vmem:[#allocation5 + $0x50] sm:$0xff]
    %v97 = vld [vmem:[#allocation5 + $0x58] sm:$0xff]
    %v98 = vld [vmem:[#allocation5 + $0x60] sm:$0xff]
    %v99 = vld [vmem:[#allocation5 + $0x68] sm:$0xff]
    %v100 = vld [vmem:[#allocation5 + $0x70] sm:$0xff]
    %v101 = vld [vmem:[#allocation5 + $0x78] sm:$0xff]
    %v102 = vld [vmem:[#allocation5 + $0x80] sm:$0xff]
    %v103 = vld [vmem:[#allocation5 + $0x88] sm:$0xff]
    %v104 = vld [vmem:[#allocation5 + $0x90] sm:$0xff]
    %v105 = vld [vmem:[#allocation5 + $0x98] sm:$0xff]
    %v106 = vld [vmem:[#allocation5 + $0xa0] sm:$0xff]
    %v107 = vld [vmem:[#allocation5 + $0xa8] sm:$0xff]
    %v108 = vld [vmem:[#allocation5 + $0xb0] sm:$0xff]
    %v109 = vld [vmem:[#allocation5 + $0xb8] sm:$0xff]
    %v110 = vld [vmem:[#allocation5 + $0xc0] sm:$0xff]
    %v111 = vld [vmem:[#allocation5 + $0xc8] sm:$0xff]
    %v112 = vld [vmem:[#allocation5 + $0xd0] sm:$0xff]
    %v113 = vld [vmem:[#allocation5 + $0xd8] sm:$0xff]
    %v114 = vld [vmem:[#allocation5 + $0xe0] sm:$0xff]
    %v115 = vld [vmem:[#allocation5 + $0xe8] sm:$0xff]
    %v116 = vld [vmem:[#allocation5 + $0xf0] sm:$0xff]
    %v117 = vld [vmem:[#allocation5 + $0xf8] sm:$0xff]
    %v118 = vld [vmem:[#allocation5 + $0x100] sm:$0xff]
    %v119 = vld [vmem:[#allocation5 + $0x108] sm:$0xff]
    %v120 = vld [vmem:[#allocation5 + $0x110] sm:$0xff]
    %v121 = vld [vmem:[#allocation5 + $0x118] sm:$0xff]
    %v122 = vld [vmem:[#allocation5 + $0x120] sm:$0xff]
    %v123 = vld [vmem:[#allocation5 + $0x128] sm:$0xff]
    %v124 = vld [vmem:[#allocation5 + $0x130] sm:$0xff]
    %v125 = vld [vmem:[#allocation5 + $0x138] sm:$0xff]
    %v126 = vld [vmem:[#allocation5 + $0x140] sm:$0xff]
    %v127 = vld [vmem:[#allocation5 + $0x148] sm:$0xff]
    %v128 = vld [vmem:[#allocation5 + $0x150] sm:$0xff]
    %v129 = vld [vmem:[#allocation5 + $0x158] sm:$0xff]
    %v130 = vld [vmem:[#allocation5 + $0x160] sm:$0xff]
    %v131 = vld [vmem:[#allocation5 + $0x168] sm:$0xff]
    %v132 = vld [vmem:[#allocation5 + $0x170] sm:$0xff]
    %v133 = vld [vmem:[#allocation5 + $0x178] sm:$0xff]
    %v134 = vld [vmem:[#allocation5 + $0x180] sm:$0xff]
    %v135 = vld [vmem:[#allocation5 + $0x188] sm:$0xff]
    %v136 = vld [vmem:[#allocation5 + $0x190] sm:$0xff]
    %v137 = vld [vmem:[#allocation5 + $0x198] sm:$0xff]
    %v138 = vld [vmem:[#allocation5 + $0x1a0] sm:$0xff]
    %v139 = vld [vmem:[#allocation5 + $0x1a8] sm:$0xff]
    %v140 = vld [vmem:[#allocation5 + $0x1b0] sm:$0xff]
    %v141 = vld [vmem:[#allocation5 + $0x1b8] sm:$0xff]
    %v142 = vld [vmem:[#allocation5 + $0x1c0] sm:$0xff]
    %v143 = vld [vmem:[#allocation5 + $0x1c8] sm:$0xff]
    %v144 = vld [vmem:[#allocation5 + $0x1d0] sm:$0xff]
    %v145 = vld [vmem:[#allocation5 + $0x1d8] sm:$0xff]
    %v146 = vld [vmem:[#allocation5 + $0x1e0] sm:$0xff]
    %v147 = vld [vmem:[#allocation5 + $0x1e8] sm:$0xff]
    %v148 = vld [vmem:[#allocation5 + $0x1f0] sm:$0xff]
    %v149 = vld [vmem:[#allocation5 + $0x1f8] sm:$0xff]
    %v150 = vld [vmem:[#allocation5 + $0x200] sm:$0xff]
    %v151 = vld [vmem:[#allocation5 + $0x208] sm:$0xff]
    %v152 = vld [vmem:[#allocation5 + $0x210] sm:$0xff]
    %v153 = vld [vmem:[#allocation5 + $0x218] sm:$0xff]
    %v154 = vld [vmem:[#allocation5 + $0x220] sm:$0xff]
    %v155 = vld [vmem:[#allocation5 + $0x228] sm:$0xff]
    %v156 = vld [vmem:[#allocation5 + $0x230] sm:$0xff]
    %v157 = vld [vmem:[#allocation5 + $0x238] sm:$0xff]
    %v158 = vld [vmem:[#allocation5 + $0x240] sm:$0xff]
    %v159 = vld [vmem:[#allocation5 + $0x248] sm:$0xff]
    %v160 = vld [vmem:[#allocation5 + $0x250] sm:$0xff]
    %v161 = vld [vmem:[#allocation5 + $0x258] sm:$0xff]
    %v162 = vld [vmem:[#allocation5 + $0x260] sm:$0xff]
    %v163 = vld [vmem:[#allocation5 + $0x268] sm:$0xff]
    %v164 = vld [vmem:[#allocation5 + $0x270] sm:$0xff]
    %v165 = vld [vmem:[#allocation5 + $0x278] sm:$0xff]
    %v166 = vld [vmem:[#allocation5 + $0x280] sm:$0xff]
    %v167 = vld [vmem:[#allocation5 + $0x288] sm:$0xff]
    %v168 = vld [vmem:[#allocation5 + $0x290] sm:$0xff]
    %v169 = vld [vmem:[#allocation5 + $0x298] sm:$0xff]
    %v170 = vld [vmem:[#allocation5 + $0x2a0] sm:$0xff]
    %v171 = vld [vmem:[#allocation5 + $0x2a8] sm:$0xff]
    %v172 = vld [vmem:[#allocation5 + $0x2b0] sm:$0xff]
    %v173 = vld [vmem:[#allocation5 + $0x2b8] sm:$0xff]
    %v174 = vld [vmem:[#allocation5 + $0x2c0] sm:$0xff]
    %v175 = vld [vmem:[#allocation5 + $0x2c8] sm:$0xff]
    %v176 = vld [vmem:[#allocation5 + $0x2d0] sm:$0xff]
    %v177 = vld [vmem:[#allocation5 + $0x2d8] sm:$0xff]
    %v178 = vld [vmem:[#allocation5 + $0x2e0] sm:$0xff]
    %v179 = vld [vmem:[#allocation5 + $0x2e8] sm:$0xff]
    %v180 = vld [vmem:[#allocation5 + $0x2f0] sm:$0xff]
    %v181 = vld [vmem:[#allocation5 + $0x2f8] sm:$0xff]
    %v182 = vld [vmem:[#allocation5 + $0x300] sm:$0xff]
    %v183 = vld [vmem:[#allocation5 + $0x308] sm:$0xff]
    %v184 = vld [vmem:[#allocation5 + $0x310] sm:$0xff]
    %v185 = vld [vmem:[#allocation5 + $0x318] sm:$0xff]
    %v186 = vld [vmem:[#allocation5 + $0x320] sm:$0xff]
    %v187 = vld [vmem:[#allocation5 + $0x328] sm:$0xff]
    %v188 = vld [vmem:[#allocation5 + $0x330] sm:$0xff]
    %v189 = vld [vmem:[#allocation5 + $0x338] sm:$0xff]
    %v190 = vld [vmem:[#allocation5 + $0x340] sm:$0xff]
    %v191 = vld [vmem:[#allocation5 + $0x348] sm:$0xff]
    %v192 = vld [vmem:[#allocation5 + $0x350] sm:$0xff]
    %v193 = vld [vmem:[#allocation5 + $0x358] sm:$0xff]
    %v194 = vld [vmem:[#allocation5 + $0x360] sm:$0xff]
    %v195 = vld [vmem:[#allocation5 + $0x368] sm:$0xff]
    %v196 = vld [vmem:[#allocation5 + $0x370] sm:$0xff]
    %v197 = vld [vmem:[#allocation5 + $0x378] sm:$0xff]
    %v198 = vld [vmem:[#allocation5 + $0x380] sm:$0xff]
    %v199 = vld [vmem:[#allocation5 + $0x388] sm:$0xff]
    %v200 = vld [vmem:[#allocation5 + $0x390] sm:$0xff]
    %v201 = vld [vmem:[#allocation5 + $0x398] sm:$0xff]
    %v202 = vld [vmem:[#allocation5 + $0x3a0] sm:$0xff]
    %v203 = vld [vmem:[#allocation5 + $0x3a8] sm:$0xff]
    %v204 = vld [vmem:[#allocation5 + $0x3b0] sm:$0xff]
    %v205 = vld [vmem:[#allocation5 + $0x3b8] sm:$0xff]
    %v206 = vld [vmem:[#allocation5 + $0x3c0] sm:$0xff]
    %v207 = vld [vmem:[#allocation5 + $0x3c8] sm:$0xff]
    %v208 = vld [vmem:[#allocation5 + $0x3d0] sm:$0xff]
    %v209 = vld [vmem:[#allocation5 + $0x3d8] sm:$0xff]
    %v210 = vld [vmem:[#allocation5 + $0x3e0] sm:$0xff]
    %v211 = vld [vmem:[#allocation5 + $0x3e8] sm:$0xff]
    %v212 = vld [vmem:[#allocation5 + $0x3f0] sm:$0xff]
    %v213 = vld [vmem:[#allocation5 + $0x3f8] sm:$0xff]
    %v214 = vld [vmem:[#allocation5 + $0x400] sm:$0xff]
    %v215 = vld [vmem:[#allocation5 + $0x408] sm:$0xff]
    %v216 = vld [vmem:[#allocation5 + $0x410] sm:$0xff]
    %v217 = vld [vmem:[#allocation5 + $0x418] sm:$0xff]
    %v218 = vld [vmem:[#allocation5 + $0x420] sm:$0xff]
    %v219 = vld [vmem:[#allocation5 + $0x428] sm:$0xff]
    %v220 = vld [vmem:[#allocation5 + $0x430] sm:$0xff]
    %v221 = vld [vmem:[#allocation5 + $0x438] sm:$0xff]
    %v222 = vld [vmem:[#allocation5 + $0x440] sm:$0xff]
    %v223 = vld [vmem:[#allocation5 + $0x448] sm:$0xff]
    %v224 = vld [vmem:[#allocation5 + $0x450] sm:$0xff]
    %v225 = vld [vmem:[#allocation5 + $0x458] sm:$0xff]
    %v226 = vld [vmem:[#allocation5 + $0x460] sm:$0xff]
    %v227 = vld [vmem:[#allocation5 + $0x468] sm:$0xff]
    %v228 = vld [vmem:[#allocation5 + $0x470] sm:$0xff]
    %v229 = vld [vmem:[#allocation5 + $0x478] sm:$0xff]
    %v230 = vld [vmem:[#allocation5 + $0x480] sm:$0xff]
    %v231 = vld [vmem:[#allocation5 + $0x488] sm:$0xff]
    %v232 = vld [vmem:[#allocation5 + $0x490] sm:$0xff]
    %v233 = vld [vmem:[#allocation5 + $0x498] sm:$0xff]
    %v234 = vld [vmem:[#allocation5 + $0x4a0] sm:$0xff]
    %v235 = vld [vmem:[#allocation5 + $0x4a8] sm:$0xff]
    %v236 = vld [vmem:[#allocation5 + $0x4b0] sm:$0xff]
    %v237 = vld [vmem:[#allocation5 + $0x4b8] sm:$0xff]
    %v238 = vld [vmem:[#allocation5 + $0x4c0] sm:$0xff]
    %v239 = vld [vmem:[#allocation5 + $0x4c8] sm:$0xff]
    %v240 = vld [vmem:[#allocation5 + $0x4d0] sm:$0xff]
    %v241 = vld [vmem:[#allocation5 + $0x4d8] sm:$0xff]
    %v242 = vld [vmem:[#allocation5 + $0x4e0] sm:$0xff]
    %v243 = vld [vmem:[#allocation5 + $0x4e8] sm:$0xff]
    %v244 = vld [vmem:[#allocation5 + $0x4f0] sm:$0xff]
    %v245 = vld [vmem:[#allocation5 + $0x4f8] sm:$0xff]
    %v246 = vld [vmem:[#allocation5 + $0x500] sm:$0xff]
    %v247 = vld [vmem:[#allocation5 + $0x508] sm:$0xff]
    %v248 = vld [vmem:[#allocation5 + $0x510] sm:$0xff]
    %v249 = vld [vmem:[#allocation5 + $0x518] sm:$0xff]
    %v250 = vld [vmem:[#allocation5 + $0x520] sm:$0xff]
    %v251 = vld [vmem:[#allocation5 + $0x528] sm:$0xff]
    %v252 = vld [vmem:[#allocation5 + $0x530] sm:$0xff]
    %v253 = vld [vmem:[#allocation5 + $0x538] sm:$0xff]
    %v254 = vld [vmem:[#allocation5 + $0x540] sm:$0xff]
    %v255 = vld [vmem:[#allocation5 + $0x548] sm:$0xff]
    %v256 = vld [vmem:[#allocation5 + $0x550] sm:$0xff]
    %v257 = vld [vmem:[#allocation5 + $0x558] sm:$0xff]
    %v258 = vld [vmem:[#allocation5 + $0x560] sm:$0xff]
    %v259 = vld [vmem:[#allocation5 + $0x568] sm:$0xff]
    %v260 = vld [vmem:[#allocation5 + $0x570] sm:$0xff]
    %v261 = vld [vmem:[#allocation5 + $0x578] sm:$0xff]
    %v262 = vld [vmem:[#allocation5 + $0x580] sm:$0xff]
    %v263 = vld [vmem:[#allocation5 + $0x588] sm:$0xff]
    %v264 = vld [vmem:[#allocation5 + $0x590] sm:$0xff]
    %v265 = vld [vmem:[#allocation5 + $0x598] sm:$0xff]
    %v266 = vld [vmem:[#allocation5 + $0x5a0] sm:$0xff]
    %v267 = vld [vmem:[#allocation5 + $0x5a8] sm:$0xff]
    %v268 = vld [vmem:[#allocation5 + $0x5b0] sm:$0xff]
    %v269 = vld [vmem:[#allocation5 + $0x5b8] sm:$0xff]
    %v270 = vld [vmem:[#allocation5 + $0x5c0] sm:$0xff]
    %v271 = vld [vmem:[#allocation5 + $0x5c8] sm:$0xff]
    %v272 = vld [vmem:[#allocation5 + $0x5d0] sm:$0xff]
    %v273 = vld [vmem:[#allocation5 + $0x5d8] sm:$0xff]
    %v274 = vld [vmem:[#allocation5 + $0x5e0] sm:$0xff]
    %v275 = vld [vmem:[#allocation5 + $0x5e8] sm:$0xff]
    %v276 = vld [vmem:[#allocation5 + $0x5f0] sm:$0xff]
    %v277 = vld [vmem:[#allocation5 + $0x5f8] sm:$0xff]
    %v278 = vld [vmem:[#allocation5 + $0x600] sm:$0xff]
    %v279 = vld [vmem:[#allocation5 + $0x608] sm:$0xff]
    %v280 = vld [vmem:[#allocation5 + $0x610] sm:$0xff]
    %v281 = vld [vmem:[#allocation5 + $0x618] sm:$0xff]
    %v282 = vld [vmem:[#allocation5 + $0x620] sm:$0xff]
    %v283 = vld [vmem:[#allocation5 + $0x628] sm:$0xff]
    %v284 = vld [vmem:[#allocation5 + $0x630] sm:$0xff]
    %v285 = vld [vmem:[#allocation5 + $0x638] sm:$0xff]
    %v286 = vld [vmem:[#allocation5 + $0x640] sm:$0xff]
    %v287 = vld [vmem:[#allocation5 + $0x648] sm:$0xff]
    %v288 = vld [vmem:[#allocation5 + $0x650] sm:$0xff]
    %v289 = vld [vmem:[#allocation5 + $0x658] sm:$0xff]
    %v290 = vld [vmem:[#allocation5 + $0x660] sm:$0xff]
    %v291 = vld [vmem:[#allocation5 + $0x668] sm:$0xff]
    %v292 = vld [vmem:[#allocation5 + $0x670] sm:$0xff]
    %v293 = vld [vmem:[#allocation5 + $0x678] sm:$0xff]
    %v294 = vld [vmem:[#allocation5 + $0x680] sm:$0xff]
    %v295 = vld [vmem:[#allocation5 + $0x688] sm:$0xff]
    %v296 = vld [vmem:[#allocation5 + $0x690] sm:$0xff]
    %v297 = vld [vmem:[#allocation5 + $0x698] sm:$0xff]
    %v298 = vld [vmem:[#allocation5 + $0x6a0] sm:$0xff]
    %v299 = vld [vmem:[#allocation5 + $0x6a8] sm:$0xff]
    %v300 = vld [vmem:[#allocation5 + $0x6b0] sm:$0xff]
    %v301 = vld [vmem:[#allocation5 + $0x6b8] sm:$0xff]
    %v302 = vld [vmem:[#allocation5 + $0x6c0] sm:$0xff]
    %v303 = vld [vmem:[#allocation5 + $0x6c8] sm:$0xff]
    %v304 = vld [vmem:[#allocation5 + $0x6d0] sm:$0xff]
    %v305 = vld [vmem:[#allocation5 + $0x6d8] sm:$0xff]
    %v306 = vld [vmem:[#allocation5 + $0x6e0] sm:$0xff]
    %v307 = vld [vmem:[#allocation5 + $0x6e8] sm:$0xff]
    %v308 = vld [vmem:[#allocation5 + $0x6f0] sm:$0xff]
    %v309 = vld [vmem:[#allocation5 + $0x6f8] sm:$0xff]
    %v310 = vld [vmem:[#allocation5 + $0x700] sm:$0xff]
    %v311 = vld [vmem:[#allocation5 + $0x708] sm:$0xff]
    %v312 = vld [vmem:[#allocation5 + $0x710] sm:$0xff]
    %v313 = vld [vmem:[#allocation5 + $0x718] sm:$0xff]
    %v314 = vld [vmem:[#allocation5 + $0x720] sm:$0xff]
    %v315 = vld [vmem:[#allocation5 + $0x728] sm:$0xff]
    %v316 = vld [vmem:[#allocation5 + $0x730] sm:$0xff]
    %v317 = vld [vmem:[#allocation5 + $0x738] sm:$0xff]
    %v318 = vld [vmem:[#allocation5 + $0x740] sm:$0xff]
    %v319 = vld [vmem:[#allocation5 + $0x748] sm:$0xff]
    %v320 = vld [vmem:[#allocation5 + $0x750] sm:$0xff]
    %v321 = vld [vmem:[#allocation5 + $0x758] sm:$0xff]
    %v322 = vld [vmem:[#allocation5 + $0x760] sm:$0xff]
    %v323 = vld [vmem:[#allocation5 + $0x768] sm:$0xff]
    %v324 = vld [vmem:[#allocation5 + $0x770] sm:$0xff]
    %v325 = vld [vmem:[#allocation5 + $0x778] sm:$0xff]
    %v326 = vld [vmem:[#allocation5 + $0x780] sm:$0xff]
    %v327 = vld [vmem:[#allocation5 + $0x788] sm:$0xff]
    %v328 = vld [vmem:[#allocation5 + $0x790] sm:$0xff]
    %v329 = vld [vmem:[#allocation5 + $0x798] sm:$0xff]
    %v330 = vld [vmem:[#allocation5 + $0x7a0] sm:$0xff]
    %v331 = vld [vmem:[#allocation5 + $0x7a8] sm:$0xff]
    %v332 = vld [vmem:[#allocation5 + $0x7b0] sm:$0xff]
    %v333 = vld [vmem:[#allocation5 + $0x7b8] sm:$0xff]
    %v334 = vld [vmem:[#allocation5 + $0x7c0] sm:$0xff]
    %v335 = vld [vmem:[#allocation5 + $0x7c8] sm:$0xff]
    %v336 = vld [vmem:[#allocation5 + $0x7d0] sm:$0xff]
    %v337 = vld [vmem:[#allocation5 + $0x7d8] sm:$0xff]
    %v338 = vld [vmem:[#allocation5 + $0x7e0] sm:$0xff]
    %v339 = vld [vmem:[#allocation5 + $0x7e8] sm:$0xff]
    %v340 = vld [vmem:[#allocation5 + $0x7f0] sm:$0xff]
    %v341 = vld [vmem:[#allocation5 + $0x7f8] sm:$0xff]
    %v342 = vld [vmem:[#allocation7] sm:$0xff]
    %v344 = vperm.slane %v342, 0
    %v345 = vperm.slane %v342, 1
    %v346 = vperm.slane %v342, 2
    %v347 = vperm.slane %v342, 3
    %v348 = vperm.slane %v342, 4
    %v349 = vperm.slane %v342, 5
    %v350 = vperm.slane %v342, 6
    %v351 = vperm.slane %v342, 7
    %360 = vmatpush.msra.mxu0 %v206
    %361 = vmatpush.msra.mxu0 %v198
    %362 = vmatpush.msra.mxu0 %v190
    %363 = vmatpush.msra.mxu0 %v182
    %364 = vmatpush.msra.mxu0 %v174
    %365 = vmatpush.msra.mxu0 %v166
    %366 = vmatpush.msra.mxu0 %v158
    %367 = vmatpush.msra.mxu0 %v150
    %368 = vmatpush.msra.mxu0 %v142
    %369 = vmatpush.msra.mxu0 %v134
    %370 = vmatpush.msra.mxu0 %v126
    %371 = vmatpush.msra.mxu0 %v118
    %372 = vmatpush.msra.mxu0 %v110
    %373 = vmatpush.msra.mxu0 %v102
    %374 = vmatpush.msra.mxu0 %v94
    %375 = vmatpush.msra.mxu0 %v86
    %376 = vmatmul.f32.gmra.mxu0 %v82
    %v377 = vpop.f32.mrf.mxu0
    %v378 = vadd.f32 %v344, %v377
    %379 = vmatmul.f32.gmra.mxu0 %v84
    %v380 = vpop.f32.mrf.mxu0
    %v381 = vadd.f32 %v344, %v380
    %382 = vdwg.mxu0
    %383 = vmatpush.msra.mxu0 %v334
    %384 = vmatpush.msra.mxu0 %v326
    %385 = vmatpush.msra.mxu0 %v318
    %386 = vmatpush.msra.mxu0 %v310
    %387 = vmatpush.msra.mxu0 %v302
    %388 = vmatpush.msra.mxu0 %v294
    %389 = vmatpush.msra.mxu0 %v286
    %390 = vmatpush.msra.mxu0 %v278
    %391 = vmatpush.msra.mxu0 %v270
    %392 = vmatpush.msra.mxu0 %v262
    %393 = vmatpush.msra.mxu0 %v254
    %394 = vmatpush.msra.mxu0 %v246
    %395 = vmatpush.msra.mxu0 %v238
    %396 = vmatpush.msra.mxu0 %v230
    %397 = vmatpush.msra.mxu0 %v222
    %398 = vmatpush.msra.mxu0 %v214
    %399 = vmatmul.f32.gmra.mxu0 %v83
    %v400 = vpop.f32.mrf.mxu0
    %v401 = vadd.f32 %v378, %v400
    %402 = vmatmul.f32.gmra.mxu0 %v85
    %v403 = vpop.f32.mrf.mxu0
    %v404 = vadd.f32 %v381, %v403
    %405 = vdwg.mxu0
    %406 = vmatpush.msra.mxu0 %v207
    %407 = vmatpush.msra.mxu0 %v199
    %408 = vmatpush.msra.mxu0 %v191
    %409 = vmatpush.msra.mxu0 %v183
    %410 = vmatpush.msra.mxu0 %v175
    %411 = vmatpush.msra.mxu0 %v167
    %412 = vmatpush.msra.mxu0 %v159
    %413 = vmatpush.msra.mxu0 %v151
    %414 = vmatpush.msra.mxu0 %v143
    %415 = vmatpush.msra.mxu0 %v135
    %416 = vmatpush.msra.mxu0 %v127
    %417 = vmatpush.msra.mxu0 %v119
    %418 = vmatpush.msra.mxu0 %v111
    %419 = vmatpush.msra.mxu0 %v103
    %420 = vmatpush.msra.mxu0 %v95
    %421 = vmatpush.msra.mxu0 %v87
    %422 = vmatmul.f32.gmra.mxu0 %v82
    %v423 = vpop.f32.mrf.mxu0
    %v424 = vadd.f32 %v345, %v423
    %425 = vmatmul.f32.gmra.mxu0 %v84
    %v426 = vpop.f32.mrf.mxu0
    %v427 = vadd.f32 %v345, %v426
    %428 = vdwg.mxu0
    %429 = vmatpush.msra.mxu0 %v335
    %430 = vmatpush.msra.mxu0 %v327
    %431 = vmatpush.msra.mxu0 %v319
    %432 = vmatpush.msra.mxu0 %v311
    %433 = vmatpush.msra.mxu0 %v303
    %434 = vmatpush.msra.mxu0 %v295
    %435 = vmatpush.msra.mxu0 %v287
    %436 = vmatpush.msra.mxu0 %v279
    %437 = vmatpush.msra.mxu0 %v271
    %438 = vmatpush.msra.mxu0 %v263
    %439 = vmatpush.msra.mxu0 %v255
    %440 = vmatpush.msra.mxu0 %v247
    %441 = vmatpush.msra.mxu0 %v239
    %442 = vmatpush.msra.mxu0 %v231
    %443 = vmatpush.msra.mxu0 %v223
    %444 = vmatpush.msra.mxu0 %v215
    %445 = vmatmul.f32.gmra.mxu0 %v83
    %v446 = vpop.f32.mrf.mxu0
    %v447 = vadd.f32 %v424, %v446
    %448 = vmatmul.f32.gmra.mxu0 %v85
    %v449 = vpop.f32.mrf.mxu0
    %v450 = vadd.f32 %v427, %v449
    %451 = vdwg.mxu0
    %452 = vmatpush.msra.mxu0 %v208
    %453 = vmatpush.msra.mxu0 %v200
    %454 = vmatpush.msra.mxu0 %v192
    %455 = vmatpush.msra.mxu0 %v184
    %456 = vmatpush.msra.mxu0 %v176
    %457 = vmatpush.msra.mxu0 %v168
    %458 = vmatpush.msra.mxu0 %v160
    %459 = vmatpush.msra.mxu0 %v152
    %460 = vmatpush.msra.mxu0 %v144
    %461 = vmatpush.msra.mxu0 %v136
    %462 = vmatpush.msra.mxu0 %v128
    %463 = vmatpush.msra.mxu0 %v120
    %464 = vmatpush.msra.mxu0 %v112
    %465 = vmatpush.msra.mxu0 %v104
    %466 = vmatpush.msra.mxu0 %v96
    %467 = vmatpush.msra.mxu0 %v88
    %468 = vmatmul.f32.gmra.mxu0 %v82
    %v469 = vpop.f32.mrf.mxu0
    %v470 = vadd.f32 %v346, %v469
    %471 = vmatmul.f32.gmra.mxu0 %v84
    %v472 = vpop.f32.mrf.mxu0
    %v473 = vadd.f32 %v346, %v472
    %474 = vdwg.mxu0
    %475 = vmatpush.msra.mxu0 %v336
    %476 = vmatpush.msra.mxu0 %v328
    %477 = vmatpush.msra.mxu0 %v320
    %478 = vmatpush.msra.mxu0 %v312
    %479 = vmatpush.msra.mxu0 %v304
    %480 = vmatpush.msra.mxu0 %v296
    %481 = vmatpush.msra.mxu0 %v288
    %482 = vmatpush.msra.mxu0 %v280
    %483 = vmatpush.msra.mxu0 %v272
    %484 = vmatpush.msra.mxu0 %v264
    %485 = vmatpush.msra.mxu0 %v256
    %486 = vmatpush.msra.mxu0 %v248
    %487 = vmatpush.msra.mxu0 %v240
    %488 = vmatpush.msra.mxu0 %v232
    %489 = vmatpush.msra.mxu0 %v224
    %490 = vmatpush.msra.mxu0 %v216
    %491 = vmatmul.f32.gmra.mxu0 %v83
    %v492 = vpop.f32.mrf.mxu0
    %v493 = vadd.f32 %v470, %v492
    %494 = vmatmul.f32.gmra.mxu0 %v85
    %v495 = vpop.f32.mrf.mxu0
    %v496 = vadd.f32 %v473, %v495
    %497 = vdwg.mxu0
    %498 = vmatpush.msra.mxu0 %v209
    %499 = vmatpush.msra.mxu0 %v201
    %500 = vmatpush.msra.mxu0 %v193
    %501 = vmatpush.msra.mxu0 %v185
    %502 = vmatpush.msra.mxu0 %v177
    %503 = vmatpush.msra.mxu0 %v169
    %504 = vmatpush.msra.mxu0 %v161
    %505 = vmatpush.msra.mxu0 %v153
    %506 = vmatpush.msra.mxu0 %v145
    %507 = vmatpush.msra.mxu0 %v137
    %508 = vmatpush.msra.mxu0 %v129
    %509 = vmatpush.msra.mxu0 %v121
    %510 = vmatpush.msra.mxu0 %v113
    %511 = vmatpush.msra.mxu0 %v105
    %512 = vmatpush.msra.mxu0 %v97
    %513 = vmatpush.msra.mxu0 %v89
    %514 = vmatmul.f32.gmra.mxu0 %v82
    %v515 = vpop.f32.mrf.mxu0
    %v516 = vadd.f32 %v347, %v515
    %517 = vmatmul.f32.gmra.mxu0 %v84
    %v518 = vpop.f32.mrf.mxu0
    %v519 = vadd.f32 %v347, %v518
    %520 = vdwg.mxu0
    %521 = vmatpush.msra.mxu0 %v337
    %522 = vmatpush.msra.mxu0 %v329
    %523 = vmatpush.msra.mxu0 %v321
    %524 = vmatpush.msra.mxu0 %v313
    %525 = vmatpush.msra.mxu0 %v305
    %526 = vmatpush.msra.mxu0 %v297
    %527 = vmatpush.msra.mxu0 %v289
    %528 = vmatpush.msra.mxu0 %v281
    %529 = vmatpush.msra.mxu0 %v273
    %530 = vmatpush.msra.mxu0 %v265
    %531 = vmatpush.msra.mxu0 %v257
    %532 = vmatpush.msra.mxu0 %v249
    %533 = vmatpush.msra.mxu0 %v241
    %534 = vmatpush.msra.mxu0 %v233
    %535 = vmatpush.msra.mxu0 %v225
    %536 = vmatpush.msra.mxu0 %v217
    %537 = vmatmul.f32.gmra.mxu0 %v83
    %v538 = vpop.f32.mrf.mxu0
    %v539 = vadd.f32 %v516, %v538
    %540 = vmatmul.f32.gmra.mxu0 %v85
    %v541 = vpop.f32.mrf.mxu0
    %v542 = vadd.f32 %v519, %v541
    %543 = vdwg.mxu0
    %544 = vmatpush.msra.mxu0 %v210
    %545 = vmatpush.msra.mxu0 %v202
    %546 = vmatpush.msra.mxu0 %v194
    %547 = vmatpush.msra.mxu0 %v186
    %548 = vmatpush.msra.mxu0 %v178
    %549 = vmatpush.msra.mxu0 %v170
    %550 = vmatpush.msra.mxu0 %v162
    %551 = vmatpush.msra.mxu0 %v154
    %552 = vmatpush.msra.mxu0 %v146
    %553 = vmatpush.msra.mxu0 %v138
    %554 = vmatpush.msra.mxu0 %v130
    %555 = vmatpush.msra.mxu0 %v122
    %556 = vmatpush.msra.mxu0 %v114
    %557 = vmatpush.msra.mxu0 %v106
    %558 = vmatpush.msra.mxu0 %v98
    %559 = vmatpush.msra.mxu0 %v90
    %560 = vmatmul.f32.gmra.mxu0 %v82
    %v561 = vpop.f32.mrf.mxu0
    %v562 = vadd.f32 %v348, %v561
    %563 = vmatmul.f32.gmra.mxu0 %v84
    %v564 = vpop.f32.mrf.mxu0
    %v565 = vadd.f32 %v348, %v564
    %566 = vdwg.mxu0
    %567 = vmatpush.msra.mxu0 %v338
    %568 = vmatpush.msra.mxu0 %v330
    %569 = vmatpush.msra.mxu0 %v322
    %570 = vmatpush.msra.mxu0 %v314
    %571 = vmatpush.msra.mxu0 %v306
    %572 = vmatpush.msra.mxu0 %v298
    %573 = vmatpush.msra.mxu0 %v290
    %574 = vmatpush.msra.mxu0 %v282
    %575 = vmatpush.msra.mxu0 %v274
    %576 = vmatpush.msra.mxu0 %v266
    %577 = vmatpush.msra.mxu0 %v258
    %578 = vmatpush.msra.mxu0 %v250
    %579 = vmatpush.msra.mxu0 %v242
    %580 = vmatpush.msra.mxu0 %v234
    %581 = vmatpush.msra.mxu0 %v226
    %582 = vmatpush.msra.mxu0 %v218
    %583 = vmatmul.f32.gmra.mxu0 %v83
    %v584 = vpop.f32.mrf.mxu0
    %v585 = vadd.f32 %v562, %v584
    %586 = vmatmul.f32.gmra.mxu0 %v85
    %v587 = vpop.f32.mrf.mxu0
    %v588 = vadd.f32 %v565, %v587
    %589 = vdwg.mxu0
    %590 = vmatpush.msra.mxu0 %v211
    %591 = vmatpush.msra.mxu0 %v203
    %592 = vmatpush.msra.mxu0 %v195
    %593 = vmatpush.msra.mxu0 %v187
    %594 = vmatpush.msra.mxu0 %v179
    %595 = vmatpush.msra.mxu0 %v171
    %596 = vmatpush.msra.mxu0 %v163
    %597 = vmatpush.msra.mxu0 %v155
    %598 = vmatpush.msra.mxu0 %v147
    %599 = vmatpush.msra.mxu0 %v139
    %600 = vmatpush.msra.mxu0 %v131
    %601 = vmatpush.msra.mxu0 %v123
    %602 = vmatpush.msra.mxu0 %v115
    %603 = vmatpush.msra.mxu0 %v107
    %604 = vmatpush.msra.mxu0 %v99
    %605 = vmatpush.msra.mxu0 %v91
    %606 = vmatmul.f32.gmra.mxu0 %v82
    %v607 = vpop.f32.mrf.mxu0
    %v608 = vadd.f32 %v349, %v607
    %609 = vmatmul.f32.gmra.mxu0 %v84
    %v610 = vpop.f32.mrf.mxu0
    %v611 = vadd.f32 %v349, %v610
    %612 = vdwg.mxu0
    %613 = vmatpush.msra.mxu0 %v339
    %614 = vmatpush.msra.mxu0 %v331
    %615 = vmatpush.msra.mxu0 %v323
    %616 = vmatpush.msra.mxu0 %v315
    %617 = vmatpush.msra.mxu0 %v307
    %618 = vmatpush.msra.mxu0 %v299
    %619 = vmatpush.msra.mxu0 %v291
    %620 = vmatpush.msra.mxu0 %v283
    %621 = vmatpush.msra.mxu0 %v275
    %622 = vmatpush.msra.mxu0 %v267
    %623 = vmatpush.msra.mxu0 %v259
    %624 = vmatpush.msra.mxu0 %v251
    %625 = vmatpush.msra.mxu0 %v243
    %626 = vmatpush.msra.mxu0 %v235
    %627 = vmatpush.msra.mxu0 %v227
    %628 = vmatpush.msra.mxu0 %v219
    %629 = vmatmul.f32.gmra.mxu0 %v83
    %v630 = vpop.f32.mrf.mxu0
    %v631 = vadd.f32 %v608, %v630
    %632 = vmatmul.f32.gmra.mxu0 %v85
    %v633 = vpop.f32.mrf.mxu0
    %v634 = vadd.f32 %v611, %v633
    %635 = vdwg.mxu0
    %636 = vmatpush.msra.mxu0 %v212
    %637 = vmatpush.msra.mxu0 %v204
    %638 = vmatpush.msra.mxu0 %v196
    %639 = vmatpush.msra.mxu0 %v188
    %640 = vmatpush.msra.mxu0 %v180
    %641 = vmatpush.msra.mxu0 %v172
    %642 = vmatpush.msra.mxu0 %v164
    %643 = vmatpush.msra.mxu0 %v156
    %644 = vmatpush.msra.mxu0 %v148
    %645 = vmatpush.msra.mxu0 %v140
    %646 = vmatpush.msra.mxu0 %v132
    %647 = vmatpush.msra.mxu0 %v124
    %648 = vmatpush.msra.mxu0 %v116
    %649 = vmatpush.msra.mxu0 %v108
    %650 = vmatpush.msra.mxu0 %v100
    %651 = vmatpush.msra.mxu0 %v92
    %652 = vmatmul.f32.gmra.mxu0 %v82
    %v653 = vpop.f32.mrf.mxu0
    %v654 = vadd.f32 %v350, %v653
    %655 = vmatmul.f32.gmra.mxu0 %v84
    %v656 = vpop.f32.mrf.mxu0
    %v657 = vadd.f32 %v350, %v656
    %658 = vdwg.mxu0
    %659 = vmatpush.msra.mxu0 %v340
    %660 = vmatpush.msra.mxu0 %v332
    %661 = vmatpush.msra.mxu0 %v324
    %662 = vmatpush.msra.mxu0 %v316
    %663 = vmatpush.msra.mxu0 %v308
    %664 = vmatpush.msra.mxu0 %v300
    %665 = vmatpush.msra.mxu0 %v292
    %666 = vmatpush.msra.mxu0 %v284
    %667 = vmatpush.msra.mxu0 %v276
    %668 = vmatpush.msra.mxu0 %v268
    %669 = vmatpush.msra.mxu0 %v260
    %670 = vmatpush.msra.mxu0 %v252
    %671 = vmatpush.msra.mxu0 %v244
    %672 = vmatpush.msra.mxu0 %v236
    %673 = vmatpush.msra.mxu0 %v228
    %674 = vmatpush.msra.mxu0 %v220
    %675 = vmatmul.f32.gmra.mxu0 %v83
    %v676 = vpop.f32.mrf.mxu0
    %v677 = vadd.f32 %v654, %v676
    %678 = vmatmul.f32.gmra.mxu0 %v85
    %v679 = vpop.f32.mrf.mxu0
    %v680 = vadd.f32 %v657, %v679
    %681 = vdwg.mxu0
    %682 = vmatpush.msra.mxu0 %v213
    %683 = vmatpush.msra.mxu0 %v205
    %684 = vmatpush.msra.mxu0 %v197
    %685 = vmatpush.msra.mxu0 %v189
    %686 = vmatpush.msra.mxu0 %v181
    %687 = vmatpush.msra.mxu0 %v173
    %688 = vmatpush.msra.mxu0 %v165
    %689 = vmatpush.msra.mxu0 %v157
    %690 = vmatpush.msra.mxu0 %v149
    %691 = vmatpush.msra.mxu0 %v141
    %692 = vmatpush.msra.mxu0 %v133
    %693 = vmatpush.msra.mxu0 %v125
    %694 = vmatpush.msra.mxu0 %v117
    %695 = vmatpush.msra.mxu0 %v109
    %696 = vmatpush.msra.mxu0 %v101
    %697 = vmatpush.msra.mxu0 %v93
    %698 = vmatmul.f32.gmra.mxu0 %v82
    %v699 = vpop.f32.mrf.mxu0
    %v700 = vadd.f32 %v351, %v699
    %701 = vmatmul.f32.gmra.mxu0 %v84
    %v702 = vpop.f32.mrf.mxu0
    %v703 = vadd.f32 %v351, %v702
    %704 = vdwg.mxu0
    %705 = vmatpush.msra.mxu0 %v341
    %706 = vmatpush.msra.mxu0 %v333
    %707 = vmatpush.msra.mxu0 %v325
    %708 = vmatpush.msra.mxu0 %v317
    %709 = vmatpush.msra.mxu0 %v309
    %710 = vmatpush.msra.mxu0 %v301
    %711 = vmatpush.msra.mxu0 %v293
    %712 = vmatpush.msra.mxu0 %v285
    %713 = vmatpush.msra.mxu0 %v277
    %714 = vmatpush.msra.mxu0 %v269
    %715 = vmatpush.msra.mxu0 %v261
    %716 = vmatpush.msra.mxu0 %v253
    %717 = vmatpush.msra.mxu0 %v245
    %718 = vmatpush.msra.mxu0 %v237
    %719 = vmatpush.msra.mxu0 %v229
    %720 = vmatpush.msra.mxu0 %v221
    %721 = vmatmul.f32.gmra.mxu0 %v83
    %v722 = vpop.f32.mrf.mxu0
    %v723 = vadd.f32 %v700, %v722
    %724 = vmatmul.f32.gmra.mxu0 %v85
    %v725 = vpop.f32.mrf.mxu0
    %v726 = vadd.f32 %v703, %v725
    %727 = vdwg.mxu0
    %728 = vst [vmem:[#allocation10] sm:$0xff] %v401
    %729 = vst [vmem:[#allocation10 + $0x8] sm:$0xff] %v447
    %730 = vst [vmem:[#allocation10 + $0x10] sm:$0xff] %v493
    %731 = vst [vmem:[#allocation10 + $0x18] sm:$0xff] %v539
    %732 = vst [vmem:[#allocation10 + $0x20] sm:$0xff] %v585
    %733 = vst [vmem:[#allocation10 + $0x28] sm:$0xff] %v631
    %734 = vst [vmem:[#allocation10 + $0x38] sm:$0xff] %v404
    %735 = vst [vmem:[#allocation10 + $0x40] sm:$0xff] %v450
    %736 = vst [vmem:[#allocation10 + $0x48] sm:$0xff] %v496
    %737 = vst [vmem:[#allocation10 + $0x50] sm:$0xff] %v542
    %738 = vst [vmem:[#allocation10 + $0x58] sm:$0xff] %v588
    %739 = vst [vmem:[#allocation10 + $0x60] sm:$0xff] %v634
    %v740 = vmax.f32 %v677, 0.0
    %v741 = vmax.f32 %v723, 0.0
    %v742 = vmax.f32 %v680, 0.0
    %v743 = vmax.f32 %v726, 0.0
    %v744 = vld [vmem:[#allocation8] sm:$0xff]
    %v745 = vld [vmem:[#allocation8 + $0x8] sm:$0xff]
    %v746 = vld [vmem:[#allocation8 + $0x10] sm:$0xff]
    %v747 = vld [vmem:[#allocation8 + $0x18] sm:$0xff]
    %v748 = vld [vmem:[#allocation8 + $0x20] sm:$0xff]
    %v749 = vld [vmem:[#allocation8 + $0x28] sm:$0xff]
    %v750 = vld [vmem:[#allocation8 + $0x30] sm:$0xff]
    %v751 = vld [vmem:[#allocation8 + $0x38] sm:$0xff]
    %v752 = vld [vmem:[#allocation8 + $0x40] sm:$0xff]
    %v753 = vld [vmem:[#allocation8 + $0x48] sm:$0xff]
    %v754 = vld [vmem:[#allocation8 + $0x50] sm:$0xff]
    %v755 = vld [vmem:[#allocation8 + $0x58] sm:$0xff]
    %v756 = vld [vmem:[#allocation8 + $0x60] sm:$0xff]
    %v757 = vld [vmem:[#allocation8 + $0x68] sm:$0xff]
    %v758 = vld [vmem:[#allocation8 + $0x70] sm:$0xff]
    %v759 = vld [vmem:[#allocation8 + $0x78] sm:$0xff]
    %v760 = vld [vmem:[#allocation8 + $0x80] sm:$0xff]
    %v761 = vld [vmem:[#allocation8 + $0x88] sm:$0xff]
    %v762 = vld [vmem:[#allocation8 + $0x90] sm:$0xff]
    %v763 = vld [vmem:[#allocation8 + $0x98] sm:$0xff]
    %v764 = vld [vmem:[#allocation8 + $0xa0] sm:$0xff]
    %v765 = vld [vmem:[#allocation8 + $0xa8] sm:$0xff]
    %v766 = vld [vmem:[#allocation8 + $0xb0] sm:$0xff]
    %v767 = vld [vmem:[#allocation8 + $0xb8] sm:$0xff]
    %v768 = vld [vmem:[#allocation8 + $0xc0] sm:$0xff]
    %v769 = vld [vmem:[#allocation8 + $0xc8] sm:$0xff]
    %v770 = vld [vmem:[#allocation8 + $0xd0] sm:$0xff]
    %v771 = vld [vmem:[#allocation8 + $0xd8] sm:$0xff]
    %v772 = vld [vmem:[#allocation8 + $0xe0] sm:$0xff]
    %v773 = vld [vmem:[#allocation8 + $0xe8] sm:$0xff]
    %v774 = vld [vmem:[#allocation8 + $0xf0] sm:$0xff]
    %v775 = vld [vmem:[#allocation8 + $0xf8] sm:$0xff]
    %v776 = vld [vmem:[%s4] sm:$0x1]
    %v778 = vperm.slane %v776, 0
    %780 = vmatpush.msra.mxu0 %v759
    %781 = vmatpush.msra.mxu0 %v758
    %782 = vmatpush.msra.mxu0 %v757
    %783 = vmatpush.msra.mxu0 %v756
    %784 = vmatpush.msra.mxu0 %v755
    %785 = vmatpush.msra.mxu0 %v754
    %786 = vmatpush.msra.mxu0 %v753
    %787 = vmatpush.msra.mxu0 %v752
    %788 = vmatpush.msra.mxu0 %v751
    %789 = vmatpush.msra.mxu0 %v750
    %790 = vmatpush.msra.mxu0 %v749
    %791 = vmatpush.msra.mxu0 %v748
    %792 = vmatpush.msra.mxu0 %v747
    %793 = vmatpush.msra.mxu0 %v746
    %794 = vmatpush.msra.mxu0 %v745
    %795 = vmatpush.msra.mxu0 %v744
    %796 = vmatmul.f32.gmra.mxu0 %v740
    %v797 = vpop.f32.mrf.mxu0
    %v798 = vadd.f32 %v778, %v797
    %799 = vmatmul.f32.gmra.mxu0 %v742
    %v800 = vpop.f32.mrf.mxu0
    %v801 = vadd.f32 %v778, %v800
    %802 = vdwg.mxu0
    %803 = vmatpush.msra.mxu0 %v775
    %804 = vmatpush.msra.mxu0 %v774
    %805 = vmatpush.msra.mxu0 %v773
    %806 = vmatpush.msra.mxu0 %v772
    %807 = vmatpush.msra.mxu0 %v771
    %808 = vmatpush.msra.mxu0 %v770
    %809 = vmatpush.msra.mxu0 %v769
    %810 = vmatpush.msra.mxu0 %v768
    %811 = vmatpush.msra.mxu0 %v767
    %812 = vmatpush.msra.mxu0 %v766
    %813 = vmatpush.msra.mxu0 %v765
    %814 = vmatpush.msra.mxu0 %v764
    %815 = vmatpush.msra.mxu0 %v763
    %816 = vmatpush.msra.mxu0 %v762
    %817 = vmatpush.msra.mxu0 %v761
    %818 = vmatpush.msra.mxu0 %v760
    %819 = vmatmul.f32.gmra.mxu0 %v741
    %v820 = vpop.f32.mrf.mxu0
    %v821 = vadd.f32 %v798, %v820
    %822 = vmatmul.f32.gmra.mxu0 %v743
    %v823 = vpop.f32.mrf.mxu0
    %v824 = vadd.f32 %v801, %v823
    %825 = vdwg.mxu0
    %826 = vst [vmem:[#allocation10 + $0x30] sm:$0xff] %v821
    %827 = vst [vmem:[#allocation10 + $0x68] sm:$0xff] %v824
    // Predicated region
    $region38: #{tpu_custom_call.1} parent=1 // pred_check
      _
    $region39: #{tpu_custom_call.1} parent=1 // pred_check_branch
      %829 = sbr.rel (0) target = $region41
    $region40: #{tpu_custom_call.1} parent=1 // pred_region
      %831 = vsyncadd [#allocation4], 0
      %s832 = sshll.u32 [#allocation10], 4
      %s833 = int_to_ptr.vmem [resolvable:$true] %s832
      %s834 = sshll.u32 %s5, 4
      %s835 = int_to_ptr.hbm [resolvable:$true] %s834
      %840 = dma.vmem_to_hbm [thread:$0]  %s833, 1792, %s835, [#allocation4], 896, 896, 56
    $region41: #{tpu_custom_call.1} parent=1 // pred_fallthru
      _
    // Predicated region
    $region42: #{tpu_custom_call.1} parent=1 // pred_check
      _
    $region43: #{tpu_custom_call.1} parent=1 // pred_check_branch
      %842 = sbr.rel (0) target = $region45
    $region44: #{tpu_custom_call.1} parent=1 // pred_region
      %844 = dma.done [#allocation4], 1792
    $region45: #{tpu_custom_call.1} parent=1 // pred_fallthru
      _
    %845 = vsyncpa [#allocation3], 1
    %846 = vsyncpa [#allocation6], 1
    %847 = vsyncpa [#allocation9], 1
    %848 = vsyncpa [#allocation4], 1

</llo_original>
